<compile_context>
chip_gen: v7x
topology: tpu7x:2x2x1
jax: 0.10.0
libtpu: 0.0.40
codegen_flags: <defaults>
</compile_context>

<pallas_src>
import jax
import jax.numpy as jnp
from jax.experimental import pallas as pl
from jax.experimental.pallas import tpu as pltpu


_LANE = 128      # last-dim (lane) tile
_SUBLANE = 8     # second-to-last-dim (sublane) tile for f32


def _round_up(n, m):
    return (n + m - 1) // m * m


def _actor_kernel(x_ref, w1_ref, b1_ref, w2_ref, b2_ref, out_ref):
    """sigmoid(relu(x @ W1 + b1) @ W2 + b2) on one (tb, .) batch tile."""
    # Hidden layer: MXU matmul (operands in weight dtype, f32 accumulation),
    # bias + ReLU on the VPU in f32.
    x = x_ref[...].astype(w1_ref.dtype)
    h = jnp.dot(x, w1_ref[...], preferred_element_type=jnp.float32)
    h = jnp.maximum(h + b1_ref[...], 0.0)
    # Action head: second MXU matmul; epilogue (bias, sigmoid/EUP) stays f32.
    mu = jnp.dot(h.astype(w2_ref.dtype), w2_ref[...],
                 preferred_element_type=jnp.float32)
    out_ref[...] = jax.nn.sigmoid(mu + b2_ref[...]).astype(out_ref.dtype)


def prepare_actor_params(w1, b1, w2, b2, *, matmul_dtype=jnp.bfloat16):
    """One-time parameter prep: pad ONLY the hidden dim to 128 lanes, cast
    matmul operands to `matmul_dtype` (biases stay f32 for the epilogue).

    Padding correctness: padded W1 columns / b1 lanes are zero -> relu(0)=0 for
    padded hidden lanes; padded W2 rows are zero -> they contribute nothing.
    """
    state_dim, hidden_dim = w1.shape
    hd2, action_dim = w2.shape
    assert hd2 == hidden_dim
    hp = _round_up(hidden_dim, _LANE)
    f32 = jnp.float32
    w1p = jnp.zeros((state_dim, hp), matmul_dtype).at[:, :hidden_dim].set(
        w1.astype(matmul_dtype))
    b1p = jnp.zeros((1, hp), f32).at[:, :hidden_dim].set(
        b1.reshape(1, hidden_dim).astype(f32))
    w2p = jnp.zeros((hp, action_dim), matmul_dtype).at[:hidden_dim, :].set(
        w2.astype(matmul_dtype))
    b2p = b2.reshape(1, action_dim).astype(f32)
    return w1p, b1p, w2p, b2p


def actor_forward(x, w1p, b1p, w2p, b2p, *, block_batch=2048,
                  out_dtype=jnp.float32):
    """x: (B, state_dim), f32 or bf16; returns (B, action_dim) in [0, 1].

    Parameters must come from prepare_actor_params (hidden dim padded to 128).
    block_batch caps the batch tile; the tile is also shrunk so large batches
    get >=4 (and an even number of) grid steps for 2-TC v7x balance.
    """
    B, state_dim = x.shape
    sd, hp = w1p.shape
    hp2, action_dim = w2p.shape
    assert sd == state_dim and hp2 == hp and hp % _LANE == 0

    # Batch tile: multiple of 8 sublanes, <= block_batch, and small enough that
    # large batches give each TensorCore >=2 pipelined steps.
    tb = max(_SUBLANE, min(_round_up(block_batch, _SUBLANE),
                           _round_up(pl.cdiv(B, 4), _SUBLANE)))
    bp = _round_up(B, tb)
    grid_len = bp // tb
    if grid_len > 1 and grid_len % 2:       # even grid -> balanced TCs on v7x
        grid_len += 1
        bp = grid_len * tb
    if bp != B:
        # Zero-pad batch rows only (no lane padding); padded rows are sliced
        # off below, so garbage is never returned.
        x = jnp.pad(x, ((0, bp - B), (0, 0)))

    x_bytes = jnp.dtype(x.dtype).itemsize
    w_bytes = jnp.dtype(w1p.dtype).itemsize
    o_bytes = jnp.dtype(out_dtype).itemsize
    cost = pl.CostEstimate(
        flops=2 * bp * (state_dim * hp + hp * action_dim),
        transcendentals=bp * action_dim,                       # sigmoid
        bytes_accessed=bp * state_dim * x_bytes
        + (state_dim * hp + hp * action_dim) * w_bytes
        + (hp + action_dim) * 4
        + bp * action_dim * o_bytes,
    )

    out = pl.pallas_call(
        _actor_kernel,
        out_shape=jax.ShapeDtypeStruct((bp, action_dim), out_dtype),
        grid_spec=pltpu.PrefetchScalarGridSpec(
            num_scalar_prefetch=0,
            grid=(grid_len,),
            in_specs=[
                # x tile: true state_dim (== full last dim), pipelined on batch.
                pl.BlockSpec((tb, state_dim), lambda i: (i, 0)),
                # Weights/biases: constant index maps -> VMEM-resident.
                pl.BlockSpec((state_dim, hp), lambda i: (0, 0)),   # W1
                pl.BlockSpec((1, hp), lambda i: (0, 0)),           # b1
                pl.BlockSpec((hp, action_dim), lambda i: (0, 0)),  # W2
                pl.BlockSpec((1, action_dim), lambda i: (0, 0)),   # b2
            ],
            # Output in true action_dim: masked vst beats 16x padded HBM bytes.
            out_specs=pl.BlockSpec((tb, action_dim), lambda i: (i, 0)),
        ),
        compiler_params=pltpu.CompilerParams(
            # Batch axis is fully independent -> shard across TCs on v7x.
            dimension_semantics=("parallel",),
        ),
        cost_estimate=cost,
    )(x, w1p, b1p, w2p, b2p)

    return out[:B] if bp != B else out


def init_actor_params(key, state_dim, hidden_dim, action_dim):
    """Deterministic init mimicking nn.Linear's uniform(-1/sqrt(fan_in), +)."""
    k1, k2, k3, k4 = jax.random.split(key, 4)
    lim1 = 1.0 / jnp.sqrt(state_dim)
    lim2 = 1.0 / jnp.sqrt(hidden_dim)
    w1 = jax.random.uniform(k1, (state_dim, hidden_dim), jnp.float32, -lim1, lim1)
    b1 = jax.random.uniform(k2, (1, hidden_dim), jnp.float32, -lim1, lim1)
    w2 = jax.random.uniform(k3, (hidden_dim, action_dim), jnp.float32, -lim2, lim2)
    b2 = jax.random.uniform(k4, (1, action_dim), jnp.float32, -lim2, lim2)
    return w1, b1, w2, b2


def _reference(x, w1, b1, w2, b2):
    return jax.nn.sigmoid(jnp.maximum(x @ w1 + b1, 0.0) @ w2 + b2)


if __name__ == "__main__":
    key = jax.random.PRNGKey(0)
    kx, kp = jax.random.split(key)

    batch, state_dim, hidden_dim, action_dim = 8, 16, 32, 8
    x = jax.random.normal(kx, (batch, state_dim), jnp.float32)
    w1, b1, w2, b2 = init_actor_params(kp, state_dim, hidden_dim, action_dim)

    # f32 operands, small batch (single grid step): tight check vs reference.
    p32 = prepare_actor_params(w1, b1, w2, b2, matmul_dtype=jnp.float32)
    out = jax.block_until_ready(actor_forward(x, *p32))
    ref = _reference(x, w1, b1, w2, b2)
    assert out.shape == (batch, action_dim)
    assert jnp.allclose(out, ref, atol=1e-5), "mismatch vs reference (f32, small)"

    # Training-scale batch, f32: exercises the multi-step batch-tiled grid.
    big_batch = 2048
    xb = jax.random.normal(kx, (big_batch, state_dim), jnp.float32)
    refb = _reference(xb, w1, b1, w2, b2)
    outb32 = jax.block_until_ready(actor_forward(xb, *p32, block_batch=512))
    assert outb32.shape == (big_batch, action_dim)
    assert jnp.allclose(outb32, refb, atol=1e-5), "mismatch vs reference (f32, big)"

    # bf16 matmul operands (default path, all generations): looser tolerance.
    pbf = prepare_actor_params(w1, b1, w2, b2, matmul_dtype=jnp.bfloat16)
    outbf = jax.block_until_ready(
        actor_forward(xb.astype(jnp.bfloat16), *pbf))
    assert outbf.shape == (big_batch, action_dim)
    assert jnp.allclose(outbf, refb, atol=3e-2), "mismatch vs reference (bf16)"

    print("KERNEL_OK")
</pallas_src>

<mosaic_0001>
module attributes {stable_mosaic.version = 11 : i64} {
  func.func @_actor_kernel(%arg0: i32, %arg1: memref<8x16xf32, #tpu.memory_space<vmem>>, %arg2: memref<16x128xf32, #tpu.memory_space<vmem>>, %arg3: memref<1x128xf32, #tpu.memory_space<vmem>>, %arg4: memref<128x8xf32, #tpu.memory_space<vmem>>, %arg5: memref<1x8xf32, #tpu.memory_space<vmem>>, %arg6: memref<8x8xf32, #tpu.memory_space<vmem>>) attributes {dimension_semantics = [#tpu.dimension_semantics<parallel>], iteration_bounds = array<i64: 1>, scalar_prefetch = 0 : i64, scratch_operands = 0 : i64, tpu.core_type = #tpu.core_type<tc>, window_params = [{transform_indices = @transform_0, window_bounds = array<i64: 8, 16>}, {pipeline_mode = #tpu.pipeline_mode<synchronous>, transform_indices = @transform_1, window_bounds = array<i64: 16, 128>}, {pipeline_mode = #tpu.pipeline_mode<synchronous>, transform_indices = @transform_2, window_bounds = array<i64: 1, 128>}, {pipeline_mode = #tpu.pipeline_mode<synchronous>, transform_indices = @transform_3, window_bounds = array<i64: 128, 8>}, {pipeline_mode = #tpu.pipeline_mode<synchronous>, transform_indices = @transform_4, window_bounds = array<i64: 1, 8>}, {transform_indices = @transform_5, window_bounds = array<i64: 8, 8>}]} {
    %c0 = arith.constant 0 : index
    %c0_0 = arith.constant 0 : index
    %0 = vector.load %arg1[%c0, %c0_0] : memref<8x16xf32, #tpu.memory_space<vmem>>, vector<8x16xf32>
    %c0_1 = arith.constant 0 : index
    %c0_2 = arith.constant 0 : index
    %1 = vector.load %arg2[%c0_1, %c0_2] : memref<16x128xf32, #tpu.memory_space<vmem>>, vector<16x128xf32>
    %cst = arith.constant dense<0.000000e+00> : vector<8x128xf32>
    %2 = tpu.matmul %0, %1, %cst {dimension_numbers = #tpu.dot_dimension_numbers<[1], [0], [0], [1], [0, 0, 1, 1], [], []>} : vector<8x16xf32>, vector<16x128xf32>, vector<8x128xf32> -> vector<8x128xf32>
    %c0_3 = arith.constant 0 : index
    %c0_4 = arith.constant 0 : index
    %3 = vector.load %arg3[%c0_3, %c0_4] : memref<1x128xf32, #tpu.memory_space<vmem>>, vector<1x128xf32>
    %4 = vector.broadcast %3 : vector<1x128xf32> to vector<8x128xf32>
    %5 = arith.addf %2, %4 : vector<8x128xf32>
    %cst_5 = arith.constant 0.000000e+00 : f32
    %6 = vector.broadcast %cst_5 : f32 to vector<8x128xf32>
    %7 = arith.maximumf %5, %6 : vector<8x128xf32>
    %c0_6 = arith.constant 0 : index
    %c0_7 = arith.constant 0 : index
    %8 = vector.load %arg4[%c0_6, %c0_7] : memref<128x8xf32, #tpu.memory_space<vmem>>, vector<128x8xf32>
    %cst_8 = arith.constant dense<0.000000e+00> : vector<8x8xf32>
    %9 = tpu.matmul %7, %8, %cst_8 {dimension_numbers = #tpu.dot_dimension_numbers<[1], [0], [0], [1], [0, 0, 1, 1], [], []>} : vector<8x128xf32>, vector<128x8xf32>, vector<8x8xf32> -> vector<8x8xf32>
    %c0_9 = arith.constant 0 : index
    %c0_10 = arith.constant 0 : index
    %10 = vector.load %arg5[%c0_9, %c0_10] : memref<1x8xf32, #tpu.memory_space<vmem>>, vector<1x8xf32>
    %11 = vector.broadcast %10 : vector<1x8xf32> to vector<8x8xf32>
    %12 = arith.addf %9, %11 : vector<8x8xf32>
    %13 = arith.negf %12 : vector<8x8xf32>
    %14 = math.exp %13 : vector<8x8xf32>
    %cst_11 = arith.constant 1.000000e+00 : f32
    %15 = vector.broadcast %cst_11 : f32 to vector<8x8xf32>
    %16 = arith.addf %15, %14 : vector<8x8xf32>
    %17 = arith.divf %15, %16 : vector<8x8xf32>
    %c0_12 = arith.constant 0 : index
    %c0_13 = arith.constant 0 : index
    %18 = vector.load %arg6[%c0_12, %c0_13] : memref<8x8xf32, #tpu.memory_space<vmem>>, vector<8x8xf32>
    tpu.vector_store %arg6[%c0_12, %c0_13], %17 {strides = array<i32>} : memref<8x8xf32, #tpu.memory_space<vmem>>, vector<8x8xf32>,
    return
  }
  func.func @transform_0(%arg0: i32) -> (i32, i32) {
    %c0_i32 = arith.constant 0 : i32
    %c0_i32_0 = arith.constant 0 : i32
    return %arg0, %c0_i32 : i32, i32
  }
  func.func @transform_1(%arg0: i32) -> (i32, i32) {
    %c0_i32 = arith.constant 0 : i32
    %c0_i32_0 = arith.constant 0 : i32
    %c0_i32_1 = arith.constant 0 : i32
    return %c0_i32, %c0_i32_0 : i32, i32
  }
  func.func @transform_2(%arg0: i32) -> (i32, i32) {
    %c0_i32 = arith.constant 0 : i32
    %c0_i32_0 = arith.constant 0 : i32
    %c0_i32_1 = arith.constant 0 : i32
    return %c0_i32, %c0_i32_0 : i32, i32
  }
  func.func @transform_3(%arg0: i32) -> (i32, i32) {
    %c0_i32 = arith.constant 0 : i32
    %c0_i32_0 = arith.constant 0 : i32
    %c0_i32_1 = arith.constant 0 : i32
    return %c0_i32, %c0_i32_0 : i32, i32
  }
  func.func @transform_4(%arg0: i32) -> (i32, i32) {
    %c0_i32 = arith.constant 0 : i32
    %c0_i32_0 = arith.constant 0 : i32
    %c0_i32_1 = arith.constant 0 : i32
    return %c0_i32, %c0_i32_0 : i32, i32
  }
  func.func @transform_5(%arg0: i32) -> (i32, i32) {
    %c0_i32 = arith.constant 0 : i32
    %c0_i32_0 = arith.constant 0 : i32
    return %arg0, %c0_i32 : i32, i32
  }
}

</mosaic_0001>

<llo_original>
// kernel: tpu_custom_call.1
$region0: #{tpu_custom_call.1}
  #allocation0 [shape = 'u32[]', space=smem, size = 0x4, offset = 0x4, fixed_abs, tag = 'smem constant byte address 0x4 - core index']
  #allocation1 [shape = 'u32[144,128]{1,0:T(1,128)}', space=vmem, size = 0x12000, scoped, tag = 'internal scratch']
  %s0 = inlined_call_operand.vmem [shape: f32[8,16], index: 0, kind: input, shape index: {}]
  %s1 = inlined_call_operand.vmem [shape: f32[16,128], index: 1, kind: input, shape index: {}]
  %s2 = inlined_call_operand.vmem [shape: f32[1,128], index: 2, kind: input, shape index: {}]
  %s3 = inlined_call_operand.vmem [shape: f32[128,8], index: 3, kind: input, shape index: {}]
  %s4 = inlined_call_operand.vmem [shape: f32[1,8], index: 4, kind: input, shape index: {}]
  %s5 = inlined_call_operand.hbm [shape: f32[8,8], index: 5, kind: output, shape index: {}]
  %s6 = sld [smem:[#allocation0]]
  $region30: #{tpu_custom_call.1} parent=0
    _
  %s8 = ssub.s32 1, %s6
  %s9 = scalar_select 0, %s8, %s6
  $region1: #{tpu_custom_call.1} parent=0
    #allocation2 [shape = 'u8[4096]{0}', space=vmem, size = 0x1000, scoped, tag = 'output window, operand 0, single buffered']
    #allocation3 [shape = 's32[1]{0}', space=sflag, size = 0x4, scoped, tag = 'scoped memory for tpu_custom_call.1']
    %10 = vsyncpa [#allocation3], 0
    // Predicated region
    $region2: #{tpu_custom_call.1} parent=1 // pred_check
      _
    $region3: #{tpu_custom_call.1} parent=1 // pred_check_branch
      %12 = sbr.rel (0) target = $region5
    $region4: #{tpu_custom_call.1} parent=1 // pred_region
      _
    $region5: #{tpu_custom_call.1} parent=1 // pred_fallthru
      _
    // Predicated region
    $region6: #{tpu_custom_call.1} parent=1 // pred_check
      _
    $region7: #{tpu_custom_call.1} parent=1 // pred_check_branch
      %14 = sbr.rel (0) target = $region9
    $region8: #{tpu_custom_call.1} parent=1 // pred_region
      _
    $region9: #{tpu_custom_call.1} parent=1 // pred_fallthru
      _
    // Predicated region
    $region10: #{tpu_custom_call.1} parent=1 // pred_check
      _
    $region11: #{tpu_custom_call.1} parent=1 // pred_check_branch
      %16 = sbr.rel (0) target = $region13
    $region12: #{tpu_custom_call.1} parent=1 // pred_region
      _
    $region13: #{tpu_custom_call.1} parent=1 // pred_fallthru
      _
    // Predicated region
    $region14: #{tpu_custom_call.1} parent=1 // pred_check
      _
    $region15: #{tpu_custom_call.1} parent=1 // pred_check_branch
      %18 = sbr.rel (0) target = $region17
    $region16: #{tpu_custom_call.1} parent=1 // pred_region
      _
    $region17: #{tpu_custom_call.1} parent=1 // pred_fallthru
      _
    // Predicated region
    $region18: #{tpu_custom_call.1} parent=1 // pred_check
      _
    $region19: #{tpu_custom_call.1} parent=1 // pred_check_branch
      %20 = sbr.rel (0) target = $region21
    $region20: #{tpu_custom_call.1} parent=1 // pred_region
      _
    $region21: #{tpu_custom_call.1} parent=1 // pred_fallthru
      _
    %v21 = vld [vmem:[%s0] sm:$0xff]
    %v22 = vld [vmem:[%s1] sm:$0xff]
    %v23 = vld [vmem:[%s1 + $0x8] sm:$0xff]
    %v24 = vld [vmem:[%s2] sm:$0x1]
    %v26 = vlaneseq
    %v27 = vshrl.u32 %v26, 7
    %v28 = vsub.s32 0, %v27
    %v29 = vrot.slane %v24, %v28
    %vm31 = vcmask 130048
    %v33 = vsel %vm31, %v21, 0
    %35 = vmatprep.subr.mxu0 0.0
    %36 = vmatpush1.msra.mxu0 %v22
    %37 = vmatprep.subr.mxu0 0.0
    %38 = vmatpush1.msra.mxu0 %v23
    %39 = vmatprep.subr.mxu0 0.0
    %40 = vmatpush1.msra.mxu0 0.0
    %41 = vmatprep.subr.mxu0 0.0
    %42 = vmatpush1.msra.mxu0 0.0
    %43 = vmatprep.subr.mxu0 0.0
    %44 = vmatpush1.msra.mxu0 0.0
    %45 = vmatprep.subr.mxu0 0.0
    %46 = vmatpush1.msra.mxu0 0.0
    %47 = vmatprep.subr.mxu0 0.0
    %48 = vmatpush1.msra.mxu0 0.0
    %49 = vmatprep.subr.mxu0 0.0
    %50 = vmatpush1.msra.mxu0 0.0
    %51 = vmatprep.subr.mxu0 0.0
    %52 = vmatpush1.msra.mxu0 0.0
    %53 = vmatprep.subr.mxu0 0.0
    %54 = vmatpush1.msra.mxu0 0.0
    %55 = vmatprep.subr.mxu0 0.0
    %56 = vmatpush1.msra.mxu0 0.0
    %57 = vmatprep.subr.mxu0 0.0
    %58 = vmatpush1.msra.mxu0 0.0
    %59 = vmatprep.subr.mxu0 0.0
    %60 = vmatpush1.msra.mxu0 0.0
    %61 = vmatprep.subr.mxu0 0.0
    %62 = vmatpush1.msra.mxu0 0.0
    %63 = vmatprep.subr.mxu0 0.0
    %64 = vmatpush1.msra.mxu0 0.0
    %65 = vmatprep.subr.mxu0 0.0
    %66 = vmatpush1.msra.mxu0 0.0
    %67 = vmatprep.subr.mxu0 0.0
    %68 = vmatpush1.msra.mxu0 0.0
    %69 = vmatprep.subr.mxu0 0.0
    %70 = vmatpush1.msra.mxu0 0.0
    %71 = vmatprep.subr.mxu0 0.0
    %72 = vmatpush1.msra.mxu0 0.0
    %73 = vmatprep.subr.mxu0 0.0
    %74 = vmatpush1.msra.mxu0 0.0
    %75 = vmatprep.subr.mxu0 0.0
    %76 = vmatpush1.msra.mxu0 0.0
    %77 = vmatprep.subr.mxu0 0.0
    %78 = vmatpush1.msra.mxu0 0.0
    %79 = vmatprep.subr.mxu0 0.0
    %80 = vmatpush1.msra.mxu0 0.0
    %81 = vmatprep.subr.mxu0 0.0
    %82 = vmatpush1.msra.mxu0 0.0
    %83 = vmatprep.subr.mxu0 0.0
    %84 = vmatpush1.msra.mxu0 0.0
    %85 = vmatprep.subr.mxu0 0.0
    %86 = vmatpush1.msra.mxu0 0.0
    %87 = vmatprep.subr.mxu0 0.0
    %88 = vmatpush1.msra.mxu0 0.0
    %89 = vmatprep.subr.mxu0 0.0
    %90 = vmatpush1.msra.mxu0 0.0
    %91 = vmatprep.subr.mxu0 0.0
    %92 = vmatpush1.msra.mxu0 0.0
    %93 = vmatprep.subr.mxu0 0.0
    %94 = vmatpush1.msra.mxu0 0.0
    %95 = vmatprep.subr.mxu0 0.0
    %96 = vmatpush1.msra.mxu0 0.0
    %97 = vmatprep.subr.mxu0 0.0
    %98 = vmatpush1.msra.mxu0 0.0
    %99 = vmatprep.mubr.f32.mxu0 0.0
    %100 = vmatmul.mubr.f32.gmra.mrb[0].mxu0 %v33
    %v101 = vpop.f32.mrb[0].mxu0
    %v102 = vadd.f32 %v29, %v101
    %v103 = vpop.f32.mrb[0].mxu0
    %104 = vdwg.mxu0
    %v105 = vmax.f32 %v102, 0.0
    %v106 = vld [vmem:[%s3] sm:$0xff]
    %v107 = vld [vmem:[%s3 + $0x8] sm:$0xff]
    %v108 = vld [vmem:[%s3 + $0x10] sm:$0xff]
    %v109 = vld [vmem:[%s3 + $0x18] sm:$0xff]
    %v110 = vld [vmem:[%s3 + $0x20] sm:$0xff]
    %v111 = vld [vmem:[%s3 + $0x28] sm:$0xff]
    %v112 = vld [vmem:[%s3 + $0x30] sm:$0xff]
    %v113 = vld [vmem:[%s3 + $0x38] sm:$0xff]
    %v114 = vld [vmem:[%s3 + $0x40] sm:$0xff]
    %v115 = vld [vmem:[%s3 + $0x48] sm:$0xff]
    %v116 = vld [vmem:[%s3 + $0x50] sm:$0xff]
    %v117 = vld [vmem:[%s3 + $0x58] sm:$0xff]
    %v118 = vld [vmem:[%s3 + $0x60] sm:$0xff]
    %v119 = vld [vmem:[%s3 + $0x68] sm:$0xff]
    %v120 = vld [vmem:[%s3 + $0x70] sm:$0xff]
    %v121 = vld [vmem:[%s3 + $0x78] sm:$0xff]
    %v122 = vld [vmem:[%s4] sm:$0x1]
    %v124 = vlaneseq
    %v125 = vshrl.u32 %v124, 7
    %v126 = vsub.s32 0, %v125
    %v127 = vrot.slane %v122, %v126
    %129 = vmatprep.subr.mxu0 0.0
    %130 = vmatpush1.msra.mxu0 %v106
    %131 = vmatprep.subr.mxu0 0.0
    %132 = vmatpush1.msra.mxu0 %v107
    %133 = vmatprep.subr.mxu0 0.0
    %134 = vmatpush1.msra.mxu0 %v108
    %135 = vmatprep.subr.mxu0 0.0
    %136 = vmatpush1.msra.mxu0 %v109
    %137 = vmatprep.subr.mxu0 0.0
    %138 = vmatpush1.msra.mxu0 %v110
    %139 = vmatprep.subr.mxu0 0.0
    %140 = vmatpush1.msra.mxu0 %v111
    %141 = vmatprep.subr.mxu0 0.0
    %142 = vmatpush1.msra.mxu0 %v112
    %143 = vmatprep.subr.mxu0 0.0
    %144 = vmatpush1.msra.mxu0 %v113
    %145 = vmatprep.subr.mxu0 0.0
    %146 = vmatpush1.msra.mxu0 %v114
    %147 = vmatprep.subr.mxu0 0.0
    %148 = vmatpush1.msra.mxu0 %v115
    %149 = vmatprep.subr.mxu0 0.0
    %150 = vmatpush1.msra.mxu0 %v116
    %151 = vmatprep.subr.mxu0 0.0
    %152 = vmatpush1.msra.mxu0 %v117
    %153 = vmatprep.subr.mxu0 0.0
    %154 = vmatpush1.msra.mxu0 %v118
    %155 = vmatprep.subr.mxu0 0.0
    %156 = vmatpush1.msra.mxu0 %v119
    %157 = vmatprep.subr.mxu0 0.0
    %158 = vmatpush1.msra.mxu0 %v120
    %159 = vmatprep.subr.mxu0 0.0
    %160 = vmatpush1.msra.mxu0 %v121
    %161 = vmatprep.subr.mxu0 0.0
    %162 = vmatpush1.msra.mxu0 0.0
    %163 = vmatprep.subr.mxu0 0.0
    %164 = vmatpush1.msra.mxu0 0.0
    %165 = vmatprep.subr.mxu0 0.0
    %166 = vmatpush1.msra.mxu0 0.0
    %167 = vmatprep.subr.mxu0 0.0
    %168 = vmatpush1.msra.mxu0 0.0
    %169 = vmatprep.subr.mxu0 0.0
    %170 = vmatpush1.msra.mxu0 0.0
    %171 = vmatprep.subr.mxu0 0.0
    %172 = vmatpush1.msra.mxu0 0.0
    %173 = vmatprep.subr.mxu0 0.0
    %174 = vmatpush1.msra.mxu0 0.0
    %175 = vmatprep.subr.mxu0 0.0
    %176 = vmatpush1.msra.mxu0 0.0
    %177 = vmatprep.subr.mxu0 0.0
    %178 = vmatpush1.msra.mxu0 0.0
    %179 = vmatprep.subr.mxu0 0.0
    %180 = vmatpush1.msra.mxu0 0.0
    %181 = vmatprep.subr.mxu0 0.0
    %182 = vmatpush1.msra.mxu0 0.0
    %183 = vmatprep.subr.mxu0 0.0
    %184 = vmatpush1.msra.mxu0 0.0
    %185 = vmatprep.subr.mxu0 0.0
    %186 = vmatpush1.msra.mxu0 0.0
    %187 = vmatprep.subr.mxu0 0.0
    %188 = vmatpush1.msra.mxu0 0.0
    %189 = vmatprep.subr.mxu0 0.0
    %190 = vmatpush1.msra.mxu0 0.0
    %191 = vmatprep.subr.mxu0 0.0
    %192 = vmatpush1.msra.mxu0 0.0
    %193 = vmatprep.mubr.f32.mxu0 0.0
    %194 = vmatmul.mubr.f32.gmra.mrb[0].mxu0 %v105
    %v195 = vpop.f32.mrb[0].mxu0
    %v196 = vadd.f32 %v127, %v195
    %v197 = vpop.f32.mrb[0].mxu0
    %198 = vdwg.mxu0
    %v199 = vxor.u32 %v196, 2147483648
    %v200 = vmul.f32 %v199, 1.442695
    %v201 = vpow.pop %v200
    %v202 = vadd.f32 %v201, 1.0
    %v203 = vrcp.pop %v202
    %v204 = vmul.f32 1.0, %v203
    %vm205 = vcmask 64512
    %206 = vst.msk [vmem:[#allocation2] sm:$0xff] %vm205, %v204
    // Predicated region
    $region22: #{tpu_custom_call.1} parent=1 // pred_check
      _
    $region23: #{tpu_custom_call.1} parent=1 // pred_check_branch
      %208 = sbr.rel (0) target = $region25
    $region24: #{tpu_custom_call.1} parent=1 // pred_region
      %s210 = ssub.s32 128, 128
      %211 = vsyncadd [#allocation3], %s210
      %s213 = sshll.u32 [#allocation2], 4
      %s214 = int_to_ptr.vmem [resolvable:$true] %s213
      %216 = dma.vmem_to_hbm [thread:$0]  %s214, 128, %s5, [#allocation3]
    $region25: #{tpu_custom_call.1} parent=1 // pred_fallthru
      _
    // Predicated region
    $region26: #{tpu_custom_call.1} parent=1 // pred_check
      _
    $region27: #{tpu_custom_call.1} parent=1 // pred_check_branch
      %218 = sbr.rel (0) target = $region29
    $region28: #{tpu_custom_call.1} parent=1 // pred_region
      %219 = dma.done [#allocation3], 128
    $region29: #{tpu_custom_call.1} parent=1 // pred_fallthru
      _
    %220 = vsyncpa [#allocation3], 1

</llo_original>
